<compile_context>
chip_gen: v7x
topology: tpu7x:2x2x1
jax: 0.10.0
libtpu: 0.0.40
codegen_flags: <defaults>
</compile_context>

<pallas_src>
import jax
import jax.numpy as jnp
from jax.experimental import pallas as pl
from jax.experimental.pallas import tpu as pltpu

_LANES = 128


def _round_up(x, m):
    return (x + m - 1) // m * m


def _pick_batch_tiling(B, block_b, bytes_per_row):
    """Pick (TB, padded_B, grid).

    The batch lives on the 128-lane axis, so TB must be a multiple of 128 unless
    a single block spans the whole (unpadded) batch.  Per-step VMEM footprint is
    roughly 2 (double-buffer) * TB * bytes_per_row; size it against v7x's 32 MiB
    scoped default / 64 MiB physical VMEM, not v5e/v6e's 128 MiB.
    """
    block_b = max(int(block_b), _LANES)
    # Single full-extent block for odd batch sizes that comfortably fit VMEM:
    # avoids materializing padded HBM copies of k/v entirely.
    if B % _LANES != 0 and 2 * B * bytes_per_row <= 8 * 1024 * 1024:
        return B, B, 1
    TB = max((min(block_b, B) // _LANES) * _LANES, _LANES)
    if B % TB != 0:
        # Prefer a smaller lane-multiple tile that divides B exactly (zero pad).
        t = TB - _LANES
        while t >= _LANES:
            if B % t == 0:
                TB = t
                break
            t -= _LANES
    Bp = _round_up(B, TB)
    if Bp // TB == 1 and B >= 2 * _LANES:
        # Guarantee >=2 grid steps so dimension_semantics=("parallel",) can put
        # work on both v7x TensorCores (no-op on single-core v5e/v6e).
        TB = max(((Bp // 2) // _LANES) * _LANES, _LANES)
        Bp = _round_up(B, TB)
    return TB, Bp, Bp // TB


def _attn_body(q_ref, k_ref, v_ref, m_ref, out_ref, attn_ref):
    # Batch-last (lane-dense) blocks:
    #   q_ref: (d_k, TB)  already pre-scaled by 1/temperature
    #   k_ref: (d_k, S, TB), v_ref: (S, d_v, TB), m_ref: (S, TB) int32 or None
    #   out_ref: (d_v, TB), attn_ref: (S, TB)
    d_k = k_ref.shape[0]
    S = v_ref.shape[0]

    qf = q_ref[...].astype(jnp.float32)                     # (d_k, TB)

    # scores[s, b] = sum_d q[d, b] * k[d, s, b]  -- d_k unrolled full-lane FMAs,
    # no XLU reduce, no (TB, S, d_k) broadcast intermediate.
    scores = qf[0:1, :] * k_ref[0].astype(jnp.float32)       # (1,TB)*(S,TB)->(S,TB)
    for d in range(1, d_k):
        scores = scores + qf[d:d + 1, :] * k_ref[d].astype(jnp.float32)

    if m_ref is not None:
        scores = jnp.where(m_ref[...] != 0, jnp.float32(-1000.0), scores)

    # softmax over the sequence axis (dim=2 of the PyTorch (B, 1, S) tensor);
    # with batch on lanes this is a cheap sublane reduce over S.
    m_max = jnp.max(scores, axis=0, keepdims=True)           # (1, TB)
    e = jnp.exp(scores - m_max)
    denom = jnp.sum(e, axis=0, keepdims=True)                # (1, TB)
    probs = e / denom            # exact divide: keeps 1e-5 parity with f32 PyTorch

    # TODO(synk): nn.Dropout(p=0.1) is identity at inference; training-mode
    # stochastic dropout (pltpu.prng_seed/prng_random_bits) intentionally omitted.

    attn_ref[...] = probs.astype(attn_ref.dtype)             # full-lane (S, TB) vst

    # out[dv, b] = sum_s probs[s, b] * v[s, dv, b]  -- S unrolled full-lane FMAs.
    out = probs[0:1, :] * v_ref[0].astype(jnp.float32)        # (1,TB)*(d_v,TB)
    for s in range(1, S):
        out = out + probs[s:s + 1, :] * v_ref[s].astype(jnp.float32)
    out_ref[...] = out.astype(out_ref.dtype)                  # full-lane (d_v, TB) vst


def _sdpa_kernel_masked(q_ref, k_ref, v_ref, m_ref, out_ref, attn_ref):
    _attn_body(q_ref, k_ref, v_ref, m_ref, out_ref, attn_ref)


def _sdpa_kernel_nomask(q_ref, k_ref, v_ref, out_ref, attn_ref):
    _attn_body(q_ref, k_ref, v_ref, None, out_ref, attn_ref)


def scaled_dot_product_attention(q, k, v, pad_mask=None, *, temperature, block_b=512):
    """q: (B, d_k), k: (B, S, d_k), v: (B, S, d_v), pad_mask: (B, S) bool/int or None.

    Returns (output (B, 1, d_v) f32, attn (B, 1, S) f32), matching the PyTorch module.
    """
    B, d_k = q.shape
    _, S, d_v = v.shape

    # Fold 1/temperature into q (free; q is tiny).
    q_scaled = q.astype(jnp.float32) * jnp.float32(1.0 / float(temperature))

    # Per-batch-row bytes moved per step (q + k + v + mask + both outputs), used
    # to bound the single-block path against the v7x scoped-VMEM budget.
    bytes_per_row = 4 * (d_k + S * d_k + S * d_v + S + d_v + S)
    TB, Bp, grid_b = _pick_batch_tiling(B, block_b, bytes_per_row)

    # Batch-last (lane-dense) layouts: TB sits on the 128-lane axis, so every
    # HBM<->VMEM block is a contiguous, full-lane slab.  k/v keep their incoming
    # dtype (bf16 inputs halve the dominant traffic; the kernel upcasts to f32).
    qT = q_scaled.T                               # (d_k, B)   f32
    kT = jnp.transpose(k, (2, 1, 0))              # (d_k, S, B)
    vT = jnp.transpose(v, (1, 2, 0))              # (S, d_v, B)

    def pad_last(x):
        if Bp == B:
            return x
        pads = [(0, 0)] * (x.ndim - 1) + [(0, Bp - B)]
        return jnp.pad(x, pads)

    in_arrays = [pad_last(qT), pad_last(kT), pad_last(vT)]
    in_specs = [
        pl.BlockSpec((d_k, TB), lambda b: (0, b)),
        pl.BlockSpec((d_k, S, TB), lambda b: (0, 0, b)),
        pl.BlockSpec((S, d_v, TB), lambda b: (0, 0, b)),
    ]

    if pad_mask is None:
        kernel = _sdpa_kernel_nomask
    else:
        kernel = _sdpa_kernel_masked
        in_arrays.append(pad_last(pad_mask.astype(jnp.int32).T))   # (S, Bp)
        in_specs.append(pl.BlockSpec((S, TB), lambda b: (0, b)))

    out_t, attn_t = pl.pallas_call(
        kernel,
        out_shape=(
            jax.ShapeDtypeStruct((d_v, Bp), jnp.float32),
            jax.ShapeDtypeStruct((S, Bp), jnp.float32),
        ),
        grid_spec=pltpu.PrefetchScalarGridSpec(
            num_scalar_prefetch=0,
            grid=(grid_b,),
            in_specs=in_specs,
            out_specs=[
                pl.BlockSpec((d_v, TB), lambda b: (0, b)),
                pl.BlockSpec((S, TB), lambda b: (0, b)),
            ],
        ),
        compiler_params=pltpu.CompilerParams(
            dimension_semantics=("parallel",),   # shards the batch across v7x's 2 TCs
        ),
    )(*in_arrays)

    # TODO(synk): return_comp=True (pre-softmax scores) not exposed by this wrapper.
    out = out_t[:, :B].T[:, None, :]     # (B, 1, d_v)
    attn = attn_t[:, :B].T[:, None, :]   # (B, 1, S)
    return out, attn


def _reference(q, k, v, pad_mask, temperature):
    # Pure-JAX reference mirroring the PyTorch forward (eval mode).
    attn = jnp.einsum("bd,bsd->bs", q, k)[:, None, :] / temperature      # (B,1,S)
    if pad_mask is not None:
        attn = jnp.where(pad_mask[:, None, :], -1000.0, attn)
    attn = jax.nn.softmax(attn, axis=2)
    out = jnp.einsum("bqs,bsd->bqd", attn, v)                            # (B,1,d_v)
    return out, attn


def _run_case(key, B, S, d_k, d_v, use_mask):
    temperature = float(d_k) ** 0.5
    kq, kk, kv, km = jax.random.split(key, 4)
    q = jax.random.normal(kq, (B, d_k), dtype=jnp.float32)
    k = jax.random.normal(kk, (B, S, d_k), dtype=jnp.float32)
    v = jax.random.normal(kv, (B, S, d_v), dtype=jnp.float32)
    pad_mask = jax.random.bernoulli(km, p=0.25, shape=(B, S)) if use_mask else None

    out, attn = scaled_dot_product_attention(q, k, v, pad_mask, temperature=temperature)
    out, attn = jax.block_until_ready((out, attn))
    out_ref, attn_ref = _reference(q, k, v, pad_mask, temperature)
    assert out.shape == (B, 1, d_v) and attn.shape == (B, 1, S)
    assert jnp.allclose(out, out_ref, atol=1e-5, rtol=1e-5)
    assert jnp.allclose(attn, attn_ref, atol=1e-5, rtol=1e-5)


if __name__ == "__main__":
    # Small shapes consistent with LTAE: B = n_head*batch = 4*2, seq = 16,
    # d_k = 8 (per-head key dim), d_v = 32 (per-head value dim).
    key = jax.random.PRNGKey(0)
    k0, k1, k2 = jax.random.split(key, 3)

    # Masked + mask-free paths, single full-extent block (B = 8, grid = 1).
    _run_case(k0, B=8, S=16, d_k=8, d_v=32, use_mask=True)
    _run_case(k1, B=8, S=16, d_k=8, d_v=32, use_mask=False)

    # Lane-multiple batch exercising the tiled multi-step path (TB=128, grid=3).
    _run_case(k2, B=384, S=16, d_k=8, d_v=32, use_mask=True)

    print("KERNEL_OK")
</pallas_src>

<mosaic_0001>
module attributes {stable_mosaic.version = 11 : i64} {
  func.func @_sdpa_kernel_masked(%arg0: i32, %arg1: memref<8x8xf32, #tpu.memory_space<vmem>>, %arg2: memref<8x16x8xf32, #tpu.memory_space<vmem>>, %arg3: memref<16x32x8xf32, #tpu.memory_space<vmem>>, %arg4: memref<16x8xi32, #tpu.memory_space<vmem>>, %arg5: memref<32x8xf32, #tpu.memory_space<vmem>>, %arg6: memref<16x8xf32, #tpu.memory_space<vmem>>) attributes {dimension_semantics = [#tpu.dimension_semantics<parallel>], iteration_bounds = array<i64: 1>, scalar_prefetch = 0 : i64, scratch_operands = 0 : i64, tpu.core_type = #tpu.core_type<tc>, window_params = [{transform_indices = @transform_0, window_bounds = array<i64: 8, 8>}, {transform_indices = @transform_1, window_bounds = array<i64: 8, 16, 8>}, {transform_indices = @transform_2, window_bounds = array<i64: 16, 32, 8>}, {transform_indices = @transform_3, window_bounds = array<i64: 16, 8>}, {transform_indices = @transform_4, window_bounds = array<i64: 32, 8>}, {transform_indices = @transform_5, window_bounds = array<i64: 16, 8>}]} {
    %c0 = arith.constant 0 : index
    %c0_0 = arith.constant 0 : index
    %0 = vector.load %arg1[%c0, %c0_0] : memref<8x8xf32, #tpu.memory_space<vmem>>, vector<8x8xf32>
    %1 = vector.extract_strided_slice %0 {offsets = [0, 0], sizes = [1, 8], strides = [1, 1]} : vector<8x8xf32> to vector<1x8xf32>
    %c0_1 = arith.constant 0 : index
    %c0_2 = arith.constant 0 : index
    %c0_3 = arith.constant 0 : index
    %2 = vector.load %arg2[%c0_1, %c0_2, %c0_3] : memref<8x16x8xf32, #tpu.memory_space<vmem>>, vector<1x16x8xf32>
    %3 = vector.shape_cast %2 : vector<1x16x8xf32> to vector<16x8xf32>
    %4 = vector.broadcast %1 : vector<1x8xf32> to vector<16x8xf32>
    %5 = arith.mulf %4, %3 : vector<16x8xf32>
    %6 = vector.extract_strided_slice %0 {offsets = [1, 0], sizes = [1, 8], strides = [1, 1]} : vector<8x8xf32> to vector<1x8xf32>
    %c1 = arith.constant 1 : index
    %c0_4 = arith.constant 0 : index
    %c0_5 = arith.constant 0 : index
    %7 = vector.load %arg2[%c1, %c0_4, %c0_5] : memref<8x16x8xf32, #tpu.memory_space<vmem>>, vector<1x16x8xf32>
    %8 = vector.shape_cast %7 : vector<1x16x8xf32> to vector<16x8xf32>
    %9 = vector.broadcast %6 : vector<1x8xf32> to vector<16x8xf32>
    %10 = arith.mulf %9, %8 : vector<16x8xf32>
    %11 = arith.addf %5, %10 : vector<16x8xf32>
    %12 = vector.extract_strided_slice %0 {offsets = [2, 0], sizes = [1, 8], strides = [1, 1]} : vector<8x8xf32> to vector<1x8xf32>
    %c2 = arith.constant 2 : index
    %c0_6 = arith.constant 0 : index
    %c0_7 = arith.constant 0 : index
    %13 = vector.load %arg2[%c2, %c0_6, %c0_7] : memref<8x16x8xf32, #tpu.memory_space<vmem>>, vector<1x16x8xf32>
    %14 = vector.shape_cast %13 : vector<1x16x8xf32> to vector<16x8xf32>
    %15 = vector.broadcast %12 : vector<1x8xf32> to vector<16x8xf32>
    %16 = arith.mulf %15, %14 : vector<16x8xf32>
    %17 = arith.addf %11, %16 : vector<16x8xf32>
    %18 = vector.extract_strided_slice %0 {offsets = [3, 0], sizes = [1, 8], strides = [1, 1]} : vector<8x8xf32> to vector<1x8xf32>
    %c3 = arith.constant 3 : index
    %c0_8 = arith.constant 0 : index
    %c0_9 = arith.constant 0 : index
    %19 = vector.load %arg2[%c3, %c0_8, %c0_9] : memref<8x16x8xf32, #tpu.memory_space<vmem>>, vector<1x16x8xf32>
    %20 = vector.shape_cast %19 : vector<1x16x8xf32> to vector<16x8xf32>
    %21 = vector.broadcast %18 : vector<1x8xf32> to vector<16x8xf32>
    %22 = arith.mulf %21, %20 : vector<16x8xf32>
    %23 = arith.addf %17, %22 : vector<16x8xf32>
    %24 = vector.extract_strided_slice %0 {offsets = [4, 0], sizes = [1, 8], strides = [1, 1]} : vector<8x8xf32> to vector<1x8xf32>
    %c4 = arith.constant 4 : index
    %c0_10 = arith.constant 0 : index
    %c0_11 = arith.constant 0 : index
    %25 = vector.load %arg2[%c4, %c0_10, %c0_11] : memref<8x16x8xf32, #tpu.memory_space<vmem>>, vector<1x16x8xf32>
    %26 = vector.shape_cast %25 : vector<1x16x8xf32> to vector<16x8xf32>
    %27 = vector.broadcast %24 : vector<1x8xf32> to vector<16x8xf32>
    %28 = arith.mulf %27, %26 : vector<16x8xf32>
    %29 = arith.addf %23, %28 : vector<16x8xf32>
    %30 = vector.extract_strided_slice %0 {offsets = [5, 0], sizes = [1, 8], strides = [1, 1]} : vector<8x8xf32> to vector<1x8xf32>
    %c5 = arith.constant 5 : index
    %c0_12 = arith.constant 0 : index
    %c0_13 = arith.constant 0 : index
    %31 = vector.load %arg2[%c5, %c0_12, %c0_13] : memref<8x16x8xf32, #tpu.memory_space<vmem>>, vector<1x16x8xf32>
    %32 = vector.shape_cast %31 : vector<1x16x8xf32> to vector<16x8xf32>
    %33 = vector.broadcast %30 : vector<1x8xf32> to vector<16x8xf32>
    %34 = arith.mulf %33, %32 : vector<16x8xf32>
    %35 = arith.addf %29, %34 : vector<16x8xf32>
    %36 = vector.extract_strided_slice %0 {offsets = [6, 0], sizes = [1, 8], strides = [1, 1]} : vector<8x8xf32> to vector<1x8xf32>
    %c6 = arith.constant 6 : index
    %c0_14 = arith.constant 0 : index
    %c0_15 = arith.constant 0 : index
    %37 = vector.load %arg2[%c6, %c0_14, %c0_15] : memref<8x16x8xf32, #tpu.memory_space<vmem>>, vector<1x16x8xf32>
    %38 = vector.shape_cast %37 : vector<1x16x8xf32> to vector<16x8xf32>
    %39 = vector.broadcast %36 : vector<1x8xf32> to vector<16x8xf32>
    %40 = arith.mulf %39, %38 : vector<16x8xf32>
    %41 = arith.addf %35, %40 : vector<16x8xf32>
    %42 = vector.extract_strided_slice %0 {offsets = [7, 0], sizes = [1, 8], strides = [1, 1]} : vector<8x8xf32> to vector<1x8xf32>
    %c7 = arith.constant 7 : index
    %c0_16 = arith.constant 0 : index
    %c0_17 = arith.constant 0 : index
    %43 = vector.load %arg2[%c7, %c0_16, %c0_17] : memref<8x16x8xf32, #tpu.memory_space<vmem>>, vector<1x16x8xf32>
    %44 = vector.shape_cast %43 : vector<1x16x8xf32> to vector<16x8xf32>
    %45 = vector.broadcast %42 : vector<1x8xf32> to vector<16x8xf32>
    %46 = arith.mulf %45, %44 : vector<16x8xf32>
    %47 = arith.addf %41, %46 : vector<16x8xf32>
    %c0_18 = arith.constant 0 : index
    %c0_19 = arith.constant 0 : index
    %48 = vector.load %arg4[%c0_18, %c0_19] : memref<16x8xi32, #tpu.memory_space<vmem>>, vector<16x8xi32>
    %c0_i32 = arith.constant 0 : i32
    %49 = vector.broadcast %c0_i32 : i32 to vector<16x8xi32>
    %50 = arith.cmpi ne, %48, %49 : vector<16x8xi32>
    %cst = arith.constant -1.000000e+03 : f32
    %51 = vector.broadcast %cst : f32 to vector<16x8xf32>
    %52 = arith.select %50, %51, %47 : vector<16x8xi1>, vector<16x8xf32>
    %cst_20 = arith.constant dense<0xFF800000> : vector<8xf32>
    %53 = vector.multi_reduction <maximumf>, %52, %cst_20 [0] : vector<16x8xf32> to vector<8xf32>
    %54 = vector.shape_cast %53 : vector<8xf32> to vector<1x8xf32>
    %55 = vector.broadcast %54 : vector<1x8xf32> to vector<16x8xf32>
    %56 = arith.subf %52, %55 : vector<16x8xf32>
    %57 = math.exp %56 : vector<16x8xf32>
    %cst_21 = arith.constant dense<0.000000e+00> : vector<8xf32>
    %58 = vector.multi_reduction <add>, %57, %cst_21 [0] : vector<16x8xf32> to vector<8xf32>
    %59 = vector.shape_cast %58 : vector<8xf32> to vector<1x8xf32>
    %60 = vector.broadcast %59 : vector<1x8xf32> to vector<16x8xf32>
    %61 = arith.divf %57, %60 : vector<16x8xf32>
    %c0_22 = arith.constant 0 : index
    %c0_23 = arith.constant 0 : index
    %62 = vector.load %arg6[%c0_22, %c0_23] : memref<16x8xf32, #tpu.memory_space<vmem>>, vector<16x8xf32>
    tpu.vector_store %arg6[%c0_22, %c0_23], %61 {strides = array<i32>} : memref<16x8xf32, #tpu.memory_space<vmem>>, vector<16x8xf32>,
    %63 = vector.extract_strided_slice %61 {offsets = [0, 0], sizes = [1, 8], strides = [1, 1]} : vector<16x8xf32> to vector<1x8xf32>
    %c0_24 = arith.constant 0 : index
    %c0_25 = arith.constant 0 : index
    %c0_26 = arith.constant 0 : index
    %64 = vector.load %arg3[%c0_24, %c0_25, %c0_26] : memref<16x32x8xf32, #tpu.memory_space<vmem>>, vector<1x32x8xf32>
    %65 = vector.shape_cast %64 : vector<1x32x8xf32> to vector<32x8xf32>
    %66 = vector.broadcast %63 : vector<1x8xf32> to vector<32x8xf32>
    %67 = arith.mulf %66, %65 : vector<32x8xf32>
    %68 = vector.extract_strided_slice %61 {offsets = [1, 0], sizes = [1, 8], strides = [1, 1]} : vector<16x8xf32> to vector<1x8xf32>
    %c1_27 = arith.constant 1 : index
    %c0_28 = arith.constant 0 : index
    %c0_29 = arith.constant 0 : index
    %69 = vector.load %arg3[%c1_27, %c0_28, %c0_29] : memref<16x32x8xf32, #tpu.memory_space<vmem>>, vector<1x32x8xf32>
    %70 = vector.shape_cast %69 : vector<1x32x8xf32> to vector<32x8xf32>
    %71 = vector.broadcast %68 : vector<1x8xf32> to vector<32x8xf32>
    %72 = arith.mulf %71, %70 : vector<32x8xf32>
    %73 = arith.addf %67, %72 : vector<32x8xf32>
    %74 = vector.extract_strided_slice %61 {offsets = [2, 0], sizes = [1, 8], strides = [1, 1]} : vector<16x8xf32> to vector<1x8xf32>
    %c2_30 = arith.constant 2 : index
    %c0_31 = arith.constant 0 : index
    %c0_32 = arith.constant 0 : index
    %75 = vector.load %arg3[%c2_30, %c0_31, %c0_32] : memref<16x32x8xf32, #tpu.memory_space<vmem>>, vector<1x32x8xf32>
    %76 = vector.shape_cast %75 : vector<1x32x8xf32> to vector<32x8xf32>
    %77 = vector.broadcast %74 : vector<1x8xf32> to vector<32x8xf32>
    %78 = arith.mulf %77, %76 : vector<32x8xf32>
    %79 = arith.addf %73, %78 : vector<32x8xf32>
    %80 = vector.extract_strided_slice %61 {offsets = [3, 0], sizes = [1, 8], strides = [1, 1]} : vector<16x8xf32> to vector<1x8xf32>
    %c3_33 = arith.constant 3 : index
    %c0_34 = arith.constant 0 : index
    %c0_35 = arith.constant 0 : index
    %81 = vector.load %arg3[%c3_33, %c0_34, %c0_35] : memref<16x32x8xf32, #tpu.memory_space<vmem>>, vector<1x32x8xf32>
    %82 = vector.shape_cast %81 : vector<1x32x8xf32> to vector<32x8xf32>
    %83 = vector.broadcast %80 : vector<1x8xf32> to vector<32x8xf32>
    %84 = arith.mulf %83, %82 : vector<32x8xf32>
    %85 = arith.addf %79, %84 : vector<32x8xf32>
    %86 = vector.extract_strided_slice %61 {offsets = [4, 0], sizes = [1, 8], strides = [1, 1]} : vector<16x8xf32> to vector<1x8xf32>
    %c4_36 = arith.constant 4 : index
    %c0_37 = arith.constant 0 : index
    %c0_38 = arith.constant 0 : index
    %87 = vector.load %arg3[%c4_36, %c0_37, %c0_38] : memref<16x32x8xf32, #tpu.memory_space<vmem>>, vector<1x32x8xf32>
    %88 = vector.shape_cast %87 : vector<1x32x8xf32> to vector<32x8xf32>
    %89 = vector.broadcast %86 : vector<1x8xf32> to vector<32x8xf32>
    %90 = arith.mulf %89, %88 : vector<32x8xf32>
    %91 = arith.addf %85, %90 : vector<32x8xf32>
    %92 = vector.extract_strided_slice %61 {offsets = [5, 0], sizes = [1, 8], strides = [1, 1]} : vector<16x8xf32> to vector<1x8xf32>
    %c5_39 = arith.constant 5 : index
    %c0_40 = arith.constant 0 : index
    %c0_41 = arith.constant 0 : index
    %93 = vector.load %arg3[%c5_39, %c0_40, %c0_41] : memref<16x32x8xf32, #tpu.memory_space<vmem>>, vector<1x32x8xf32>
    %94 = vector.shape_cast %93 : vector<1x32x8xf32> to vector<32x8xf32>
    %95 = vector.broadcast %92 : vector<1x8xf32> to vector<32x8xf32>
    %96 = arith.mulf %95, %94 : vector<32x8xf32>
    %97 = arith.addf %91, %96 : vector<32x8xf32>
    %98 = vector.extract_strided_slice %61 {offsets = [6, 0], sizes = [1, 8], strides = [1, 1]} : vector<16x8xf32> to vector<1x8xf32>
    %c6_42 = arith.constant 6 : index
    %c0_43 = arith.constant 0 : index
    %c0_44 = arith.constant 0 : index
    %99 = vector.load %arg3[%c6_42, %c0_43, %c0_44] : memref<16x32x8xf32, #tpu.memory_space<vmem>>, vector<1x32x8xf32>
    %100 = vector.shape_cast %99 : vector<1x32x8xf32> to vector<32x8xf32>
    %101 = vector.broadcast %98 : vector<1x8xf32> to vector<32x8xf32>
    %102 = arith.mulf %101, %100 : vector<32x8xf32>
    %103 = arith.addf %97, %102 : vector<32x8xf32>
    %104 = vector.extract_strided_slice %61 {offsets = [7, 0], sizes = [1, 8], strides = [1, 1]} : vector<16x8xf32> to vector<1x8xf32>
    %c7_45 = arith.constant 7 : index
    %c0_46 = arith.constant 0 : index
    %c0_47 = arith.constant 0 : index
    %105 = vector.load %arg3[%c7_45, %c0_46, %c0_47] : memref<16x32x8xf32, #tpu.memory_space<vmem>>, vector<1x32x8xf32>
    %106 = vector.shape_cast %105 : vector<1x32x8xf32> to vector<32x8xf32>
    %107 = vector.broadcast %104 : vector<1x8xf32> to vector<32x8xf32>
    %108 = arith.mulf %107, %106 : vector<32x8xf32>
    %109 = arith.addf %103, %108 : vector<32x8xf32>
    %110 = vector.extract_strided_slice %61 {offsets = [8, 0], sizes = [1, 8], strides = [1, 1]} : vector<16x8xf32> to vector<1x8xf32>
    %c8 = arith.constant 8 : index
    %c0_48 = arith.constant 0 : index
    %c0_49 = arith.constant 0 : index
    %111 = vector.load %arg3[%c8, %c0_48, %c0_49] : memref<16x32x8xf32, #tpu.memory_space<vmem>>, vector<1x32x8xf32>
    %112 = vector.shape_cast %111 : vector<1x32x8xf32> to vector<32x8xf32>
    %113 = vector.broadcast %110 : vector<1x8xf32> to vector<32x8xf32>
    %114 = arith.mulf %113, %112 : vector<32x8xf32>
    %115 = arith.addf %109, %114 : vector<32x8xf32>
    %116 = vector.extract_strided_slice %61 {offsets = [9, 0], sizes = [1, 8], strides = [1, 1]} : vector<16x8xf32> to vector<1x8xf32>
    %c9 = arith.constant 9 : index
    %c0_50 = arith.constant 0 : index
    %c0_51 = arith.constant 0 : index
    %117 = vector.load %arg3[%c9, %c0_50, %c0_51] : memref<16x32x8xf32, #tpu.memory_space<vmem>>, vector<1x32x8xf32>
    %118 = vector.shape_cast %117 : vector<1x32x8xf32> to vector<32x8xf32>
    %119 = vector.broadcast %116 : vector<1x8xf32> to vector<32x8xf32>
    %120 = arith.mulf %119, %118 : vector<32x8xf32>
    %121 = arith.addf %115, %120 : vector<32x8xf32>
    %122 = vector.extract_strided_slice %61 {offsets = [10, 0], sizes = [1, 8], strides = [1, 1]} : vector<16x8xf32> to vector<1x8xf32>
    %c10 = arith.constant 10 : index
    %c0_52 = arith.constant 0 : index
    %c0_53 = arith.constant 0 : index
    %123 = vector.load %arg3[%c10, %c0_52, %c0_53] : memref<16x32x8xf32, #tpu.memory_space<vmem>>, vector<1x32x8xf32>
    %124 = vector.shape_cast %123 : vector<1x32x8xf32> to vector<32x8xf32>
    %125 = vector.broadcast %122 : vector<1x8xf32> to vector<32x8xf32>
    %126 = arith.mulf %125, %124 : vector<32x8xf32>
    %127 = arith.addf %121, %126 : vector<32x8xf32>
    %128 = vector.extract_strided_slice %61 {offsets = [11, 0], sizes = [1, 8], strides = [1, 1]} : vector<16x8xf32> to vector<1x8xf32>
    %c11 = arith.constant 11 : index
    %c0_54 = arith.constant 0 : index
    %c0_55 = arith.constant 0 : index
    %129 = vector.load %arg3[%c11, %c0_54, %c0_55] : memref<16x32x8xf32, #tpu.memory_space<vmem>>, vector<1x32x8xf32>
    %130 = vector.shape_cast %129 : vector<1x32x8xf32> to vector<32x8xf32>
    %131 = vector.broadcast %128 : vector<1x8xf32> to vector<32x8xf32>
    %132 = arith.mulf %131, %130 : vector<32x8xf32>
    %133 = arith.addf %127, %132 : vector<32x8xf32>
    %134 = vector.extract_strided_slice %61 {offsets = [12, 0], sizes = [1, 8], strides = [1, 1]} : vector<16x8xf32> to vector<1x8xf32>
    %c12 = arith.constant 12 : index
    %c0_56 = arith.constant 0 : index
    %c0_57 = arith.constant 0 : index
    %135 = vector.load %arg3[%c12, %c0_56, %c0_57] : memref<16x32x8xf32, #tpu.memory_space<vmem>>, vector<1x32x8xf32>
    %136 = vector.shape_cast %135 : vector<1x32x8xf32> to vector<32x8xf32>
    %137 = vector.broadcast %134 : vector<1x8xf32> to vector<32x8xf32>
    %138 = arith.mulf %137, %136 : vector<32x8xf32>
    %139 = arith.addf %133, %138 : vector<32x8xf32>
    %140 = vector.extract_strided_slice %61 {offsets = [13, 0], sizes = [1, 8], strides = [1, 1]} : vector<16x8xf32> to vector<1x8xf32>
    %c13 = arith.constant 13 : index
    %c0_58 = arith.constant 0 : index
    %c0_59 = arith.constant 0 : index
    %141 = vector.load %arg3[%c13, %c0_58, %c0_59] : memref<16x32x8xf32, #tpu.memory_space<vmem>>, vector<1x32x8xf32>
    %142 = vector.shape_cast %141 : vector<1x32x8xf32> to vector<32x8xf32>
    %143 = vector.broadcast %140 : vector<1x8xf32> to vector<32x8xf32>
    %144 = arith.mulf %143, %142 : vector<32x8xf32>
    %145 = arith.addf %139, %144 : vector<32x8xf32>
    %146 = vector.extract_strided_slice %61 {offsets = [14, 0], sizes = [1, 8], strides = [1, 1]} : vector<16x8xf32> to vector<1x8xf32>
    %c14 = arith.constant 14 : index
    %c0_60 = arith.constant 0 : index
    %c0_61 = arith.constant 0 : index
    %147 = vector.load %arg3[%c14, %c0_60, %c0_61] : memref<16x32x8xf32, #tpu.memory_space<vmem>>, vector<1x32x8xf32>
    %148 = vector.shape_cast %147 : vector<1x32x8xf32> to vector<32x8xf32>
    %149 = vector.broadcast %146 : vector<1x8xf32> to vector<32x8xf32>
    %150 = arith.mulf %149, %148 : vector<32x8xf32>
    %151 = arith.addf %145, %150 : vector<32x8xf32>
    %152 = vector.extract_strided_slice %61 {offsets = [15, 0], sizes = [1, 8], strides = [1, 1]} : vector<16x8xf32> to vector<1x8xf32>
    %c15 = arith.constant 15 : index
    %c0_62 = arith.constant 0 : index
    %c0_63 = arith.constant 0 : index
    %153 = vector.load %arg3[%c15, %c0_62, %c0_63] : memref<16x32x8xf32, #tpu.memory_space<vmem>>, vector<1x32x8xf32>
    %154 = vector.shape_cast %153 : vector<1x32x8xf32> to vector<32x8xf32>
    %155 = vector.broadcast %152 : vector<1x8xf32> to vector<32x8xf32>
    %156 = arith.mulf %155, %154 : vector<32x8xf32>
    %157 = arith.addf %151, %156 : vector<32x8xf32>
    %c0_64 = arith.constant 0 : index
    %c0_65 = arith.constant 0 : index
    %158 = vector.load %arg5[%c0_64, %c0_65] : memref<32x8xf32, #tpu.memory_space<vmem>>, vector<32x8xf32>
    tpu.vector_store %arg5[%c0_64, %c0_65], %157 {strides = array<i32>} : memref<32x8xf32, #tpu.memory_space<vmem>>, vector<32x8xf32>,
    return
  }
  func.func @transform_0(%arg0: i32) -> (i32, i32) {
    %c0_i32 = arith.constant 0 : i32
    %c0_i32_0 = arith.constant 0 : i32
    return %c0_i32, %arg0 : i32, i32
  }
  func.func @transform_1(%arg0: i32) -> (i32, i32, i32) {
    %c0_i32 = arith.constant 0 : i32
    %c0_i32_0 = arith.constant 0 : i32
    %c0_i32_1 = arith.constant 0 : i32
    return %c0_i32, %c0_i32_0, %arg0 : i32, i32, i32
  }
  func.func @transform_2(%arg0: i32) -> (i32, i32, i32) {
    %c0_i32 = arith.constant 0 : i32
    %c0_i32_0 = arith.constant 0 : i32
    %c0_i32_1 = arith.constant 0 : i32
    return %c0_i32, %c0_i32_0, %arg0 : i32, i32, i32
  }
  func.func @transform_3(%arg0: i32) -> (i32, i32) {
    %c0_i32 = arith.constant 0 : i32
    %c0_i32_0 = arith.constant 0 : i32
    return %c0_i32, %arg0 : i32, i32
  }
  func.func @transform_4(%arg0: i32) -> (i32, i32) {
    %c0_i32 = arith.constant 0 : i32
    %c0_i32_0 = arith.constant 0 : i32
    return %c0_i32, %arg0 : i32, i32
  }
  func.func @transform_5(%arg0: i32) -> (i32, i32) {
    %c0_i32 = arith.constant 0 : i32
    %c0_i32_0 = arith.constant 0 : i32
    return %c0_i32, %arg0 : i32, i32
  }
}

</mosaic_0001>

<llo_original>
// kernel: tpu_custom_call.1
$region0: #{tpu_custom_call.1}
  #allocation0 [shape = 'u32[]', space=smem, size = 0x4, offset = 0x4, fixed_abs, tag = 'smem constant byte address 0x4 - core index']
  #allocation1 [shape = 'u32[144,128]{1,0:T(1,128)}', space=vmem, size = 0x12000, scoped, tag = 'internal scratch']
  %s0 = inlined_call_operand.vmem [shape: f32[8,8], index: 0, kind: input, shape index: {}]
  %s1 = inlined_call_operand.vmem [shape: f32[8,16,8], index: 1, kind: input, shape index: {}]
  %s2 = inlined_call_operand.vmem [shape: f32[16,32,8], index: 2, kind: input, shape index: {}]
  %s3 = inlined_call_operand.vmem [shape: s32[16,8], index: 3, kind: input, shape index: {}]
  %s4 = inlined_call_operand.vmem [shape: f32[32,8], index: 4, kind: output, shape index: {0}]
  %s5 = inlined_call_operand.vmem [shape: f32[16,8], index: 5, kind: output, shape index: {1}]
  %6 = xla_tuple %s4, %s5
  %s7 = sld [smem:[#allocation0]]
  $region34: #{tpu_custom_call.1} parent=0
    _
  %s9 = ssub.s32 1, %s7
  %s10 = scalar_select 0, %s9, %s7
  // Predicated region
  $region2: #{tpu_custom_call.1} parent=0 // pred_check
    _
  $region3: #{tpu_custom_call.1} parent=0 // pred_check_branch
    %12 = sbr.rel (0) target = $region5
  $region4: #{tpu_custom_call.1} parent=0 // pred_region
    _
  $region5: #{tpu_custom_call.1} parent=0 // pred_fallthru
    _
  // Predicated region
  $region6: #{tpu_custom_call.1} parent=0 // pred_check
    _
  $region7: #{tpu_custom_call.1} parent=0 // pred_check_branch
    %14 = sbr.rel (0) target = $region9
  $region8: #{tpu_custom_call.1} parent=0 // pred_region
    _
  $region9: #{tpu_custom_call.1} parent=0 // pred_fallthru
    _
  // Predicated region
  $region10: #{tpu_custom_call.1} parent=0 // pred_check
    _
  $region11: #{tpu_custom_call.1} parent=0 // pred_check_branch
    %16 = sbr.rel (0) target = $region13
  $region12: #{tpu_custom_call.1} parent=0 // pred_region
    _
  $region13: #{tpu_custom_call.1} parent=0 // pred_fallthru
    _
  // Predicated region
  $region14: #{tpu_custom_call.1} parent=0 // pred_check
    _
  $region15: #{tpu_custom_call.1} parent=0 // pred_check_branch
    %18 = sbr.rel (0) target = $region17
  $region16: #{tpu_custom_call.1} parent=0 // pred_region
    _
  $region17: #{tpu_custom_call.1} parent=0 // pred_fallthru
    _
  %v19 = vld [vmem:[%s0] sm:$0xff]
  %v20 = vld [vmem:[%s1] sm:$0xff]
  %v21 = vld [vmem:[%s1 + $0x8] sm:$0xff]
  %v22 = vlaneseq
  %v23 = vshrl.u32 %v22, 7
  %v24 = vsub.s32 0, %v23
  %v25 = vrot.slane %v19, %v24
  %v26 = vmul.f32 %v25, %v20
  %v27 = vmul.f32 %v25, %v21
  %s28 = scalar_lea.vmem %s1, 16
  %v29 = vld [vmem:[%s28] sm:$0xff]
  %v30 = vld [vmem:[%s28 + $0x8] sm:$0xff]
  %v31 = vlaneseq
  %v32 = vshrl.u32 %v31, 7
  %v33 = vsub.s32 1, %v32
  %v34 = vrot.slane %v19, %v33
  %v35 = vmul.f32 %v34, %v29
  %v36 = vmul.f32 %v34, %v30
  %v37 = vadd.f32 %v26, %v35
  %v38 = vadd.f32 %v27, %v36
  %s39 = scalar_lea.vmem %s1, 32
  %v40 = vld [vmem:[%s39] sm:$0xff]
  %v41 = vld [vmem:[%s39 + $0x8] sm:$0xff]
  %v42 = vlaneseq
  %v43 = vshrl.u32 %v42, 7
  %v44 = vsub.s32 2, %v43
  %v45 = vrot.slane %v19, %v44
  %v46 = vmul.f32 %v45, %v40
  %v47 = vmul.f32 %v45, %v41
  %v48 = vadd.f32 %v37, %v46
  %v49 = vadd.f32 %v38, %v47
  %s50 = scalar_lea.vmem %s1, 48
  %v51 = vld [vmem:[%s50] sm:$0xff]
  %v52 = vld [vmem:[%s50 + $0x8] sm:$0xff]
  %v53 = vlaneseq
  %v54 = vshrl.u32 %v53, 7
  %v55 = vsub.s32 3, %v54
  %v56 = vrot.slane %v19, %v55
  %v57 = vmul.f32 %v56, %v51
  %v58 = vmul.f32 %v56, %v52
  %v59 = vadd.f32 %v48, %v57
  %v60 = vadd.f32 %v49, %v58
  %s61 = scalar_lea.vmem %s1, 64
  %v62 = vld [vmem:[%s61] sm:$0xff]
  %v63 = vld [vmem:[%s61 + $0x8] sm:$0xff]
  %v64 = vlaneseq
  %v65 = vshrl.u32 %v64, 7
  %v66 = vsub.s32 4, %v65
  %v67 = vrot.slane %v19, %v66
  %v68 = vmul.f32 %v67, %v62
  %v69 = vmul.f32 %v67, %v63
  %v70 = vadd.f32 %v59, %v68
  %v71 = vadd.f32 %v60, %v69
  %s72 = scalar_lea.vmem %s1, 80
  %v73 = vld [vmem:[%s72] sm:$0xff]
  %v74 = vld [vmem:[%s72 + $0x8] sm:$0xff]
  %v75 = vlaneseq
  %v76 = vshrl.u32 %v75, 7
  %v77 = vsub.s32 5, %v76
  %v78 = vrot.slane %v19, %v77
  %v79 = vmul.f32 %v78, %v73
  %v80 = vmul.f32 %v78, %v74
  %v81 = vadd.f32 %v70, %v79
  %v82 = vadd.f32 %v71, %v80
  %s83 = scalar_lea.vmem %s1, 96
  %v84 = vld [vmem:[%s83] sm:$0xff]
  %v85 = vld [vmem:[%s83 + $0x8] sm:$0xff]
  %v86 = vlaneseq
  %v87 = vshrl.u32 %v86, 7
  %v88 = vsub.s32 6, %v87
  %v89 = vrot.slane %v19, %v88
  %v90 = vmul.f32 %v89, %v84
  %v91 = vmul.f32 %v89, %v85
  %v92 = vadd.f32 %v81, %v90
  %v93 = vadd.f32 %v82, %v91
  %s94 = scalar_lea.vmem %s1, 112
  %v95 = vld [vmem:[%s94] sm:$0xff]
  %v96 = vld [vmem:[%s94 + $0x8] sm:$0xff]
  %v97 = vlaneseq
  %v98 = vshrl.u32 %v97, 7
  %v99 = vsub.s32 7, %v98
  %v100 = vrot.slane %v19, %v99
  %v101 = vmul.f32 %v100, %v95
  %v102 = vmul.f32 %v100, %v96
  %v103 = vadd.f32 %v92, %v101
  %v104 = vadd.f32 %v93, %v102
  %v105 = vld [vmem:[%s3] sm:$0xff]
  %v106 = vld [vmem:[%s3 + $0x8] sm:$0xff]
  %vm107 = vcmp.ne.s32.totalorder %v105, 0
  %vm108 = vcmp.ne.s32.totalorder %v106, 0
  %v109 = vsel %vm107, -1000.0, %v103
  %v110 = vsel %vm108, -1000.0, %v104
  %vm111 = vcmask 64512
  %v112 = vsel %vm111, %v109, -inf
  %v113 = vsel %vm111, %v110, -inf
  %v114 = vmax.f32 %v112, %v113
  %v115 = vrot.slane %v114, 4
  %v116 = vmax.f32 %v114, %v115
  %v117 = vrot.slane %v116, 2
  %v118 = vmax.f32 %v116, %v117
  %v119 = vrot.slane %v118, 1
  %v120 = vmax.f32 %v118, %v119
  %v121 = vsub.f32 %v109, %v120
  %v122 = vsub.f32 %v110, %v120
  %v123 = vmul.f32 %v121, 1.442695
  %v124 = vpow.pop %v123
  %v125 = vmul.f32 %v122, 1.442695
  %v126 = vpow.pop %v125
  %v127 = vsel %vm111, %v124, 0.0
  %v128 = vsel %vm111, %v126, 0.0
  %v129 = vadd.f32 %v127, %v128
  %v130 = vrot.slane %v129, 4
  %v131 = vadd.f32 %v129, %v130
  %v132 = vrot.slane %v131, 2
  %v133 = vadd.f32 %v131, %v132
  %v134 = vrot.slane %v133, 1
  %v135 = vadd.f32 %v133, %v134
  %v136 = vrcp.pop %v135
  %v137 = vmul.f32 %v124, %v136
  %v138 = vmul.f32 %v126, %v136
  %139 = vst.msk [vmem:[%s5] sm:$0xff] %vm111, %v137
  %140 = vst.msk [vmem:[%s5 + $0x8] sm:$0xff] %vm111, %v138
  %v141 = vld [vmem:[%s2] sm:$0xff]
  %v142 = vld [vmem:[%s2 + $0x8] sm:$0xff]
  %v143 = vld [vmem:[%s2 + $0x10] sm:$0xff]
  %v144 = vld [vmem:[%s2 + $0x18] sm:$0xff]
  %v145 = vlaneseq
  %v146 = vshrl.u32 %v145, 7
  %v147 = vsub.s32 0, %v146
  %v148 = vrot.slane %v137, %v147
  %v149 = vmul.f32 %v148, %v141
  %v150 = vmul.f32 %v148, %v142
  %v151 = vmul.f32 %v148, %v143
  %v152 = vmul.f32 %v148, %v144
  %s153 = scalar_lea.vmem %s2, 32
  %v154 = vld [vmem:[%s153] sm:$0xff]
  %v155 = vld [vmem:[%s153 + $0x8] sm:$0xff]
  %v156 = vld [vmem:[%s153 + $0x10] sm:$0xff]
  %v157 = vld [vmem:[%s153 + $0x18] sm:$0xff]
  %v158 = vlaneseq
  %v159 = vshrl.u32 %v158, 7
  %v160 = vsub.s32 1, %v159
  %v161 = vrot.slane %v137, %v160
  %v162 = vmul.f32 %v161, %v154
  %v163 = vmul.f32 %v161, %v155
  %v164 = vmul.f32 %v161, %v156
  %v165 = vmul.f32 %v161, %v157
  %v166 = vadd.f32 %v149, %v162
  %v167 = vadd.f32 %v150, %v163
  %v168 = vadd.f32 %v151, %v164
  %v169 = vadd.f32 %v152, %v165
  %s170 = scalar_lea.vmem %s2, 64
  %v171 = vld [vmem:[%s170] sm:$0xff]
  %v172 = vld [vmem:[%s170 + $0x8] sm:$0xff]
  %v173 = vld [vmem:[%s170 + $0x10] sm:$0xff]
  %v174 = vld [vmem:[%s170 + $0x18] sm:$0xff]
  %v175 = vlaneseq
  %v176 = vshrl.u32 %v175, 7
  %v177 = vsub.s32 2, %v176
  %v178 = vrot.slane %v137, %v177
  %v179 = vmul.f32 %v178, %v171
  %v180 = vmul.f32 %v178, %v172
  %v181 = vmul.f32 %v178, %v173
  %v182 = vmul.f32 %v178, %v174
  %v183 = vadd.f32 %v166, %v179
  %v184 = vadd.f32 %v167, %v180
  %v185 = vadd.f32 %v168, %v181
  %v186 = vadd.f32 %v169, %v182
  %s187 = scalar_lea.vmem %s2, 96
  %v188 = vld [vmem:[%s187] sm:$0xff]
  %v189 = vld [vmem:[%s187 + $0x8] sm:$0xff]
  %v190 = vld [vmem:[%s187 + $0x10] sm:$0xff]
  %v191 = vld [vmem:[%s187 + $0x18] sm:$0xff]
  %v192 = vlaneseq
  %v193 = vshrl.u32 %v192, 7
  %v194 = vsub.s32 3, %v193
  %v195 = vrot.slane %v137, %v194
  %v196 = vmul.f32 %v195, %v188
  %v197 = vmul.f32 %v195, %v189
  %v198 = vmul.f32 %v195, %v190
  %v199 = vmul.f32 %v195, %v191
  %v200 = vadd.f32 %v183, %v196
  %v201 = vadd.f32 %v184, %v197
  %v202 = vadd.f32 %v185, %v198
  %v203 = vadd.f32 %v186, %v199
  %s204 = scalar_lea.vmem %s2, 128
  %v205 = vld [vmem:[%s204] sm:$0xff]
  %v206 = vld [vmem:[%s204 + $0x8] sm:$0xff]
  %v207 = vld [vmem:[%s204 + $0x10] sm:$0xff]
  %v208 = vld [vmem:[%s204 + $0x18] sm:$0xff]
  %v209 = vlaneseq
  %v210 = vshrl.u32 %v209, 7
  %v211 = vsub.s32 4, %v210
  %v212 = vrot.slane %v137, %v211
  %v213 = vmul.f32 %v212, %v205
  %v214 = vmul.f32 %v212, %v206
  %v215 = vmul.f32 %v212, %v207
  %v216 = vmul.f32 %v212, %v208
  %v217 = vadd.f32 %v200, %v213
  %v218 = vadd.f32 %v201, %v214
  %v219 = vadd.f32 %v202, %v215
  %v220 = vadd.f32 %v203, %v216
  %s221 = scalar_lea.vmem %s2, 160
  %v222 = vld [vmem:[%s221] sm:$0xff]
  %v223 = vld [vmem:[%s221 + $0x8] sm:$0xff]
  %v224 = vld [vmem:[%s221 + $0x10] sm:$0xff]
  %v225 = vld [vmem:[%s221 + $0x18] sm:$0xff]
  %v226 = vlaneseq
  %v227 = vshrl.u32 %v226, 7
  %v228 = vsub.s32 5, %v227
  %v229 = vrot.slane %v137, %v228
  %v230 = vmul.f32 %v229, %v222
  %v231 = vmul.f32 %v229, %v223
  %v232 = vmul.f32 %v229, %v224
  %v233 = vmul.f32 %v229, %v225
  %v234 = vadd.f32 %v217, %v230
  %v235 = vadd.f32 %v218, %v231
  %v236 = vadd.f32 %v219, %v232
  %v237 = vadd.f32 %v220, %v233
  %s238 = scalar_lea.vmem %s2, 192
  %v239 = vld [vmem:[%s238] sm:$0xff]
  %v240 = vld [vmem:[%s238 + $0x8] sm:$0xff]
  %v241 = vld [vmem:[%s238 + $0x10] sm:$0xff]
  %v242 = vld [vmem:[%s238 + $0x18] sm:$0xff]
  %v243 = vlaneseq
  %v244 = vshrl.u32 %v243, 7
  %v245 = vsub.s32 6, %v244
  %v246 = vrot.slane %v137, %v245
  %v247 = vmul.f32 %v246, %v239
  %v248 = vmul.f32 %v246, %v240
  %v249 = vmul.f32 %v246, %v241
  %v250 = vmul.f32 %v246, %v242
  %v251 = vadd.f32 %v234, %v247
  %v252 = vadd.f32 %v235, %v248
  %v253 = vadd.f32 %v236, %v249
  %v254 = vadd.f32 %v237, %v250
  %s255 = scalar_lea.vmem %s2, 224
  %v256 = vld [vmem:[%s255] sm:$0xff]
  %v257 = vld [vmem:[%s255 + $0x8] sm:$0xff]
  %v258 = vld [vmem:[%s255 + $0x10] sm:$0xff]
  %v259 = vld [vmem:[%s255 + $0x18] sm:$0xff]
  %v260 = vlaneseq
  %v261 = vshrl.u32 %v260, 7
  %v262 = vsub.s32 7, %v261
  %v263 = vrot.slane %v137, %v262
  %v264 = vmul.f32 %v263, %v256
  %v265 = vmul.f32 %v263, %v257
  %v266 = vmul.f32 %v263, %v258
  %v267 = vmul.f32 %v263, %v259
  %v268 = vadd.f32 %v251, %v264
  %v269 = vadd.f32 %v252, %v265
  %v270 = vadd.f32 %v253, %v266
  %v271 = vadd.f32 %v254, %v267
  %s272 = scalar_lea.vmem %s2, 256
  %v273 = vld [vmem:[%s272] sm:$0xff]
  %v274 = vld [vmem:[%s272 + $0x8] sm:$0xff]
  %v275 = vld [vmem:[%s272 + $0x10] sm:$0xff]
  %v276 = vld [vmem:[%s272 + $0x18] sm:$0xff]
  %v277 = vlaneseq
  %v278 = vshrl.u32 %v277, 7
  %v279 = vsub.s32 0, %v278
  %v280 = vrot.slane %v138, %v279
  %v281 = vmul.f32 %v280, %v273
  %v282 = vmul.f32 %v280, %v274
  %v283 = vmul.f32 %v280, %v275
  %v284 = vmul.f32 %v280, %v276
  %v285 = vadd.f32 %v268, %v281
  %v286 = vadd.f32 %v269, %v282
  %v287 = vadd.f32 %v270, %v283
  %v288 = vadd.f32 %v271, %v284
  %s289 = scalar_lea.vmem %s2, 288
  %v290 = vld [vmem:[%s289] sm:$0xff]
  %v291 = vld [vmem:[%s289 + $0x8] sm:$0xff]
  %v292 = vld [vmem:[%s289 + $0x10] sm:$0xff]
  %v293 = vld [vmem:[%s289 + $0x18] sm:$0xff]
  %v294 = vlaneseq
  %v295 = vshrl.u32 %v294, 7
  %v296 = vsub.s32 1, %v295
  %v297 = vrot.slane %v138, %v296
  %v298 = vmul.f32 %v297, %v290
  %v299 = vmul.f32 %v297, %v291
  %v300 = vmul.f32 %v297, %v292
  %v301 = vmul.f32 %v297, %v293
  %v302 = vadd.f32 %v285, %v298
  %v303 = vadd.f32 %v286, %v299
  %v304 = vadd.f32 %v287, %v300
  %v305 = vadd.f32 %v288, %v301
  %s306 = scalar_lea.vmem %s2, 320
  %v307 = vld [vmem:[%s306] sm:$0xff]
  %v308 = vld [vmem:[%s306 + $0x8] sm:$0xff]
  %v309 = vld [vmem:[%s306 + $0x10] sm:$0xff]
  %v310 = vld [vmem:[%s306 + $0x18] sm:$0xff]
  %v311 = vlaneseq
  %v312 = vshrl.u32 %v311, 7
  %v313 = vsub.s32 2, %v312
  %v314 = vrot.slane %v138, %v313
  %v315 = vmul.f32 %v314, %v307
  %v316 = vmul.f32 %v314, %v308
  %v317 = vmul.f32 %v314, %v309
  %v318 = vmul.f32 %v314, %v310
  %v319 = vadd.f32 %v302, %v315
  %v320 = vadd.f32 %v303, %v316
  %v321 = vadd.f32 %v304, %v317
  %v322 = vadd.f32 %v305, %v318
  %s323 = scalar_lea.vmem %s2, 352
  %v324 = vld [vmem:[%s323] sm:$0xff]
  %v325 = vld [vmem:[%s323 + $0x8] sm:$0xff]
  %v326 = vld [vmem:[%s323 + $0x10] sm:$0xff]
  %v327 = vld [vmem:[%s323 + $0x18] sm:$0xff]
  %v328 = vlaneseq
  %v329 = vshrl.u32 %v328, 7
  %v330 = vsub.s32 3, %v329
  %v331 = vrot.slane %v138, %v330
  %v332 = vmul.f32 %v331, %v324
  %v333 = vmul.f32 %v331, %v325
  %v334 = vmul.f32 %v331, %v326
  %v335 = vmul.f32 %v331, %v327
  %v336 = vadd.f32 %v319, %v332
  %v337 = vadd.f32 %v320, %v333
  %v338 = vadd.f32 %v321, %v334
  %v339 = vadd.f32 %v322, %v335
  %s340 = scalar_lea.vmem %s2, 384
  %v341 = vld [vmem:[%s340] sm:$0xff]
  %v342 = vld [vmem:[%s340 + $0x8] sm:$0xff]
  %v343 = vld [vmem:[%s340 + $0x10] sm:$0xff]
  %v344 = vld [vmem:[%s340 + $0x18] sm:$0xff]
  %v345 = vlaneseq
  %v346 = vshrl.u32 %v345, 7
  %v347 = vsub.s32 4, %v346
  %v348 = vrot.slane %v138, %v347
  %v349 = vmul.f32 %v348, %v341
  %v350 = vmul.f32 %v348, %v342
  %v351 = vmul.f32 %v348, %v343
  %v352 = vmul.f32 %v348, %v344
  %v353 = vadd.f32 %v336, %v349
  %v354 = vadd.f32 %v337, %v350
  %v355 = vadd.f32 %v338, %v351
  %v356 = vadd.f32 %v339, %v352
  %s357 = scalar_lea.vmem %s2, 416
  %v358 = vld [vmem:[%s357] sm:$0xff]
  %v359 = vld [vmem:[%s357 + $0x8] sm:$0xff]
  %v360 = vld [vmem:[%s357 + $0x10] sm:$0xff]
  %v361 = vld [vmem:[%s357 + $0x18] sm:$0xff]
  %v362 = vlaneseq
  %v363 = vshrl.u32 %v362, 7
  %v364 = vsub.s32 5, %v363
  %v365 = vrot.slane %v138, %v364
  %v366 = vmul.f32 %v365, %v358
  %v367 = vmul.f32 %v365, %v359
  %v368 = vmul.f32 %v365, %v360
  %v369 = vmul.f32 %v365, %v361
  %v370 = vadd.f32 %v353, %v366
  %v371 = vadd.f32 %v354, %v367
  %v372 = vadd.f32 %v355, %v368
  %v373 = vadd.f32 %v356, %v369
  %s374 = scalar_lea.vmem %s2, 448
  %v375 = vld [vmem:[%s374] sm:$0xff]
  %v376 = vld [vmem:[%s374 + $0x8] sm:$0xff]
  %v377 = vld [vmem:[%s374 + $0x10] sm:$0xff]
  %v378 = vld [vmem:[%s374 + $0x18] sm:$0xff]
  %v379 = vlaneseq
  %v380 = vshrl.u32 %v379, 7
  %v381 = vsub.s32 6, %v380
  %v382 = vrot.slane %v138, %v381
  %v383 = vmul.f32 %v382, %v375
  %v384 = vmul.f32 %v382, %v376
  %v385 = vmul.f32 %v382, %v377
  %v386 = vmul.f32 %v382, %v378
  %v387 = vadd.f32 %v370, %v383
  %v388 = vadd.f32 %v371, %v384
  %v389 = vadd.f32 %v372, %v385
  %v390 = vadd.f32 %v373, %v386
  %s391 = scalar_lea.vmem %s2, 480
  %v392 = vld [vmem:[%s391] sm:$0xff]
  %v393 = vld [vmem:[%s391 + $0x8] sm:$0xff]
  %v394 = vld [vmem:[%s391 + $0x10] sm:$0xff]
  %v395 = vld [vmem:[%s391 + $0x18] sm:$0xff]
  %v396 = vlaneseq
  %v397 = vshrl.u32 %v396, 7
  %v398 = vsub.s32 7, %v397
  %v399 = vrot.slane %v138, %v398
  %v400 = vmul.f32 %v399, %v392
  %v401 = vmul.f32 %v399, %v393
  %v402 = vmul.f32 %v399, %v394
  %v403 = vmul.f32 %v399, %v395
  %v404 = vadd.f32 %v387, %v400
  %v405 = vadd.f32 %v388, %v401
  %v406 = vadd.f32 %v389, %v402
  %v407 = vadd.f32 %v390, %v403
  %408 = vst.msk [vmem:[%s4] sm:$0xff] %vm111, %v404
  %409 = vst.msk [vmem:[%s4 + $0x8] sm:$0xff] %vm111, %v405
  %410 = vst.msk [vmem:[%s4 + $0x10] sm:$0xff] %vm111, %v406
  %411 = vst.msk [vmem:[%s4 + $0x18] sm:$0xff] %vm111, %v407
  // Predicated region
  $region18: #{tpu_custom_call.1} parent=0 // pred_check
    _
  $region19: #{tpu_custom_call.1} parent=0 // pred_check_branch
    %413 = sbr.rel (0) target = $region21
  $region20: #{tpu_custom_call.1} parent=0 // pred_region
    _
  $region21: #{tpu_custom_call.1} parent=0 // pred_fallthru
    _
  // Predicated region
  $region22: #{tpu_custom_call.1} parent=0 // pred_check
    _
  $region23: #{tpu_custom_call.1} parent=0 // pred_check_branch
    %415 = sbr.rel (0) target = $region25
  $region24: #{tpu_custom_call.1} parent=0 // pred_region
    _
  $region25: #{tpu_custom_call.1} parent=0 // pred_fallthru
    _
  // Predicated region
  $region26: #{tpu_custom_call.1} parent=0 // pred_check
    _
  $region27: #{tpu_custom_call.1} parent=0 // pred_check_branch
    %417 = sbr.rel (0) target = $region29
  $region28: #{tpu_custom_call.1} parent=0 // pred_region
    _
  $region29: #{tpu_custom_call.1} parent=0 // pred_fallthru
    _
  // Predicated region
  $region30: #{tpu_custom_call.1} parent=0 // pred_check
    _
  $region31: #{tpu_custom_call.1} parent=0 // pred_check_branch
    %419 = sbr.rel (0) target = $region33
  $region32: #{tpu_custom_call.1} parent=0 // pred_region
    _
  $region33: #{tpu_custom_call.1} parent=0 // pred_fallthru
    _

</llo_original>
